<compile_context>
chip_gen: v7x
topology: tpu7x:2x2x1
jax: 0.10.0
libtpu: 0.0.40
codegen_flags: <defaults>
</compile_context>

<pallas_src>
import math

import jax
import jax.numpy as jnp
from jax.experimental import pallas as pl
from jax.experimental.pallas import tpu as pltpu


def _round_up(x, m):
    return (x + m - 1) // m * m


def _pick_tile(n, candidates):
    for c in candidates:
        if c <= n and n % c == 0:
            return c
    return n  # fall back to the full dimension (always a legal block size)


# ---------------------------------------------------------------------------
# Prologue kernel: rhs = [x @ W | y | 0-pad]  as a bf16, lane-dense slab.
# ---------------------------------------------------------------------------
def _build_rhs_kernel(x_ref, wpad_ref, ypad_ref, rhs_ref):
    support = jnp.dot(x_ref[...], wpad_ref[...],
                      preferred_element_type=jnp.float32)
    rhs_ref[...] = (support + ypad_ref[...]).astype(rhs_ref.dtype)


# ---------------------------------------------------------------------------
# Main kernel: out_slab[i] = row_norm(adj * mask)[i] @ rhs + bias_pad
# grid = (N // TM, N // TK); axis 1 (k) is the reduction over adjacency cols.
# ---------------------------------------------------------------------------
def _gcn_lpa_adj_kernel(adj_ref, mask_ref, rhs_ref, bias_ref, out_ref, l1_ref):
    k = pl.program_id(1)

    @pl.when(k == 0)
    def _init():
        out_ref[...] = jnp.zeros_like(out_ref)
        l1_ref[...] = jnp.zeros_like(l1_ref)

    # a = adj * adjacency_mask  (VPU elementwise, f32)
    a = adj_ref[...] * mask_ref[...]

    # Row-L1 partial sums (mask is learnable and can go negative -> keep abs).
    l1_ref[...] += jnp.sum(jnp.abs(a), axis=1, keepdims=True)

    # Unnormalized fused matmul on the MXU: bf16 inputs, f32 accumulation.
    out_ref[...] += jnp.dot(a.astype(jnp.bfloat16), rhs_ref[...],
                            preferred_element_type=jnp.float32)

    @pl.when(k == pl.num_programs(1) - 1)
    def _finalize():
        # F.normalize(p=1, dim=1): divide each row by max(L1, eps).
        denom = jnp.maximum(l1_ref[...], 1e-12)
        inv = pl.reciprocal(denom, approx=True)   # EUP slot (nearly free)
        inv = inv * (2.0 - denom * inv)           # one Newton step -> ~f32 acc.
        out_ref[...] = out_ref[...] * inv + bias_ref[...]


def _vmem_budget_bytes(TM, TK, Wp):
    tile_bytes = (
        2 * 2 * TM * TK * 4    # adj + mask blocks, double-buffered, f32
        + 2 * TK * Wp * 2      # rhs block, double-buffered, bf16
        + 2 * 1 * Wp * 4       # bias block
        + 2 * TM * Wp * 4      # resident output slab block (+ writeback buf)
        + TM * 128 * 4         # L1 scratch (padded to a full lane)
    )
    # 2x headroom, floor at 8 MiB; never request anywhere near v7x's 64 MiB.
    return int(min(max(2 * tile_bytes, 8 << 20), 28 << 20))


@jax.jit
def gcn_lpa_conv(x, weight, bias, adj, adjacency_mask, y):
    N, f_in = x.shape
    f_out = weight.shape[1]
    C = y.shape[1]
    Wp = _round_up(f_out + C, 128)  # lane-dense fused output width

    # One-time, tiny layout packing (done in XLA; negligible vs the N^2 work).
    w_pad = jnp.zeros((f_in, Wp), jnp.float32).at[:, :f_out].set(weight)
    y_pad = jnp.zeros((N, Wp), jnp.float32).at[:, f_out:f_out + C].set(y)
    bias_pad = jnp.zeros((1, Wp), jnp.float32).at[0, :f_out].set(bias)

    full = lambda shape: pl.BlockSpec(shape, lambda: (0,) * len(shape))

    # --- Prologue: build the bf16 RHS slab [x @ W | y | 0] exactly once. ---
    rhs = pl.pallas_call(
        _build_rhs_kernel,
        out_shape=jax.ShapeDtypeStruct((N, Wp), jnp.bfloat16),
        grid_spec=pltpu.PrefetchScalarGridSpec(
            num_scalar_prefetch=0,
            grid=(),
            in_specs=[full((N, f_in)), full((f_in, Wp)), full((N, Wp))],
            out_specs=full((N, Wp)),
        ),
    )(x, w_pad, y_pad)

    # --- Main tiled adjacency kernel. ---
    TM = _pick_tile(N, (256, 128, 64, 32, 16, 8))
    TK = _pick_tile(N, (512, 256, 128))
    grid = (N // TM, N // TK)

    out_slab = pl.pallas_call(
        _gcn_lpa_adj_kernel,
        out_shape=jax.ShapeDtypeStruct((N, Wp), jnp.float32),
        grid_spec=pltpu.PrefetchScalarGridSpec(
            num_scalar_prefetch=0,
            grid=grid,
            in_specs=[
                pl.BlockSpec((TM, TK), lambda i, k: (i, k)),   # adj
                pl.BlockSpec((TM, TK), lambda i, k: (i, k)),   # adjacency_mask
                pl.BlockSpec((TK, Wp), lambda i, k: (k, 0)),   # rhs (bf16)
                pl.BlockSpec((1, Wp), lambda i, k: (0, 0)),    # bias_pad
            ],
            out_specs=pl.BlockSpec((TM, Wp), lambda i, k: (i, 0)),
            scratch_shapes=[pltpu.VMEM((TM, 1), jnp.float32)],  # row-L1 accum
        ),
        compiler_params=pltpu.CompilerParams(
            dimension_semantics=("parallel", "arbitrary"),
            vmem_limit_bytes=_vmem_budget_bytes(TM, TK, Wp),
        ),
    )(adj, adjacency_mask, rhs, bias_pad)

    output = out_slab[:, :f_out]
    y_hat = out_slab[:, f_out:f_out + C]
    return output, y_hat


def reference(x, weight, bias, adj, adjacency_mask, y):
    support = x @ weight
    a = adj * adjacency_mask
    a = a / jnp.maximum(jnp.sum(jnp.abs(a), axis=1, keepdims=True), 1e-12)
    return a @ support + bias[None, :], a @ y


if __name__ == "__main__":
    # Small, deterministic problem.
    N, f_in, f_out, n_classes = 128, 32, 64, 16

    key = jax.random.PRNGKey(0)
    k_x, k_w, k_b, k_adj, k_y = jax.random.split(key, 5)

    # Parameters initialized like reset_parameters(): uniform(-stdv, stdv),
    # stdv = 1/sqrt(out_features).
    stdv = 1.0 / math.sqrt(f_out)
    weight = jax.random.uniform(k_w, (f_in, f_out), jnp.float32, -stdv, stdv)
    bias = jax.random.uniform(k_b, (f_out,), jnp.float32, -stdv, stdv)

    # Node features.
    x = jax.random.normal(k_x, (N, f_in), jnp.float32)

    # Synthetic dense adjacency (random 0/1 edges plus self-loops);
    # adjacency_mask = adj.clone() as in the module __init__.
    adj = (jax.random.uniform(k_adj, (N, N), jnp.float32) < 0.1).astype(jnp.float32)
    adj = adj + jnp.eye(N, dtype=jnp.float32)
    adjacency_mask = adj

    # One-hot label matrix.
    labels = jax.random.randint(k_y, (N,), 0, n_classes)
    y = jax.nn.one_hot(labels, n_classes, dtype=jnp.float32)

    out, y_hat = gcn_lpa_conv(x, weight, bias, adj, adjacency_mask, y)
    jax.block_until_ready((out, y_hat))

    ref_out, ref_yhat = reference(x, weight, bias, adj, adjacency_mask, y)
    # Tolerance accounts for bf16 MXU inputs (f32 accumulation) in the kernel.
    assert jnp.allclose(out, ref_out, atol=1e-2, rtol=1e-2), "output mismatch"
    assert jnp.allclose(y_hat, ref_yhat, atol=1e-2, rtol=1e-2), "y_hat mismatch"

    print("KERNEL_OK")
</pallas_src>

<mosaic_0001>
module attributes {stable_mosaic.version = 11 : i64} {
  func.func @_build_rhs_kernel(%arg0: memref<128x32xf32, #tpu.memory_space<vmem>>, %arg1: memref<32x128xf32, #tpu.memory_space<vmem>>, %arg2: memref<128x128xf32, #tpu.memory_space<vmem>>, %arg3: memref<128x128xbf16, #tpu.memory_space<vmem>>) attributes {dimension_semantics = [], scalar_prefetch = 0 : i64, scratch_operands = 0 : i64, tpu.core_type = #tpu.core_type<tc>} {
    %c0 = arith.constant 0 : index
    %c0_0 = arith.constant 0 : index
    %0 = vector.load %arg0[%c0, %c0_0] : memref<128x32xf32, #tpu.memory_space<vmem>>, vector<128x32xf32>
    %c0_1 = arith.constant 0 : index
    %c0_2 = arith.constant 0 : index
    %1 = vector.load %arg1[%c0_1, %c0_2] : memref<32x128xf32, #tpu.memory_space<vmem>>, vector<32x128xf32>
    %cst = arith.constant dense<0.000000e+00> : vector<128x128xf32>
    %2 = tpu.matmul %0, %1, %cst {dimension_numbers = #tpu.dot_dimension_numbers<[1], [0], [0], [1], [0, 0, 1, 1], [], []>} : vector<128x32xf32>, vector<32x128xf32>, vector<128x128xf32> -> vector<128x128xf32>
    %c0_3 = arith.constant 0 : index
    %c0_4 = arith.constant 0 : index
    %3 = vector.load %arg2[%c0_3, %c0_4] : memref<128x128xf32, #tpu.memory_space<vmem>>, vector<128x128xf32>
    %4 = arith.addf %2, %3 : vector<128x128xf32>
    %5 = arith.truncf %4 : vector<128x128xf32> to vector<128x128xbf16>
    %c0_5 = arith.constant 0 : index
    %c0_6 = arith.constant 0 : index
    %6 = vector.load %arg3[%c0_5, %c0_6] : memref<128x128xbf16, #tpu.memory_space<vmem>>, vector<128x128xbf16>
    tpu.vector_store %arg3[%c0_5, %c0_6], %5 {strides = array<i32>} : memref<128x128xbf16, #tpu.memory_space<vmem>>, vector<128x128xbf16>,
    return
  }
}

module attributes {stable_mosaic.version = 11 : i64} {
  func.func @_gcn_lpa_adj_kernel(%arg0: i32, %arg1: i32, %arg2: memref<128x128xf32, #tpu.memory_space<vmem>>, %arg3: memref<128x128xf32, #tpu.memory_space<vmem>>, %arg4: memref<128x128xbf16, #tpu.memory_space<vmem>>, %arg5: memref<1x128xf32, #tpu.memory_space<vmem>>, %arg6: memref<128x128xf32, #tpu.memory_space<vmem>>, %arg7: memref<128x1xf32, #tpu.memory_space<vmem>>) attributes {dimension_semantics = [#tpu.dimension_semantics<parallel>, #tpu.dimension_semantics<arbitrary>], iteration_bounds = array<i64: 1, 1>, scalar_prefetch = 0 : i64, scratch_operands = 1 : i64, tpu.core_type = #tpu.core_type<tc>, window_params = [{transform_indices = @transform_0, window_bounds = array<i64: 128, 128>}, {transform_indices = @transform_1, window_bounds = array<i64: 128, 128>}, {transform_indices = @transform_2, window_bounds = array<i64: 128, 128>}, {pipeline_mode = #tpu.pipeline_mode<synchronous>, transform_indices = @transform_3, window_bounds = array<i64: 1, 128>}, {transform_indices = @transform_4, window_bounds = array<i64: 128, 128>}]} {
    %c0_i32 = arith.constant 0 : i32
    %0 = arith.cmpi eq, %arg1, %c0_i32 : i32
    %1 = arith.extui %0 : i1 to i32
    %c0_i32_0 = arith.constant 0 : i32
    %2 = arith.cmpi ne, %1, %c0_i32_0 : i32
    scf.if %2 {
      %cst_17 = arith.constant 0.000000e+00 : f32
      %21 = vector.broadcast %cst_17 : f32 to vector<128x128xf32>
      %c0_18 = arith.constant 0 : index
      %c0_19 = arith.constant 0 : index
      %22 = vector.load %arg6[%c0_18, %c0_19] : memref<128x128xf32, #tpu.memory_space<vmem>>, vector<128x128xf32>
      tpu.vector_store %arg6[%c0_18, %c0_19], %21 {strides = array<i32>} : memref<128x128xf32, #tpu.memory_space<vmem>>, vector<128x128xf32>,
      %cst_20 = arith.constant 0.000000e+00 : f32
      %23 = vector.broadcast %cst_20 : f32 to vector<128x1xf32>
      %c0_21 = arith.constant 0 : index
      %c0_22 = arith.constant 0 : index
      %24 = vector.load %arg7[%c0_21, %c0_22] : memref<128x1xf32, #tpu.memory_space<vmem>>, vector<128x1xf32>
      tpu.vector_store %arg7[%c0_21, %c0_22], %23 {strides = array<i32>} : memref<128x1xf32, #tpu.memory_space<vmem>>, vector<128x1xf32>,
    } else {
    }
    %c0 = arith.constant 0 : index
    %c0_1 = arith.constant 0 : index
    %3 = vector.load %arg2[%c0, %c0_1] : memref<128x128xf32, #tpu.memory_space<vmem>>, vector<128x128xf32>
    %c0_2 = arith.constant 0 : index
    %c0_3 = arith.constant 0 : index
    %4 = vector.load %arg3[%c0_2, %c0_3] : memref<128x128xf32, #tpu.memory_space<vmem>>, vector<128x128xf32>
    %5 = arith.mulf %3, %4 : vector<128x128xf32>
    %c0_4 = arith.constant 0 : index
    %c0_5 = arith.constant 0 : index
    %6 = vector.load %arg7[%c0_4, %c0_5] : memref<128x1xf32, #tpu.memory_space<vmem>>, vector<128x1xf32>
    %7 = math.absf %5 : vector<128x128xf32>
    %cst = arith.constant dense<0.000000e+00> : vector<128xf32>
    %8 = vector.multi_reduction <add>, %7, %cst [1] : vector<128x128xf32> to vector<128xf32>
    %9 = vector.shape_cast %8 : vector<128xf32> to vector<128x1xf32>
    %10 = arith.addf %6, %9 : vector<128x1xf32>
    %c0_6 = arith.constant 0 : index
    %c0_7 = arith.constant 0 : index
    %11 = vector.load %arg7[%c0_6, %c0_7] : memref<128x1xf32, #tpu.memory_space<vmem>>, vector<128x1xf32>
    tpu.vector_store %arg7[%c0_6, %c0_7], %10 {strides = array<i32>} : memref<128x1xf32, #tpu.memory_space<vmem>>, vector<128x1xf32>,
    %c0_8 = arith.constant 0 : index
    %c0_9 = arith.constant 0 : index
    %12 = vector.load %arg6[%c0_8, %c0_9] : memref<128x128xf32, #tpu.memory_space<vmem>>, vector<128x128xf32>
    %13 = arith.truncf %5 : vector<128x128xf32> to vector<128x128xbf16>
    %c0_10 = arith.constant 0 : index
    %c0_11 = arith.constant 0 : index
    %14 = vector.load %arg4[%c0_10, %c0_11] : memref<128x128xbf16, #tpu.memory_space<vmem>>, vector<128x128xbf16>
    %cst_12 = arith.constant dense<0.000000e+00> : vector<128x128xf32>
    %15 = tpu.matmul %13, %14, %cst_12 {dimension_numbers = #tpu.dot_dimension_numbers<[1], [0], [0], [1], [0, 0, 1, 1], [], []>} : vector<128x128xbf16>, vector<128x128xbf16>, vector<128x128xf32> -> vector<128x128xf32>
    %16 = arith.addf %12, %15 : vector<128x128xf32>
    %c0_13 = arith.constant 0 : index
    %c0_14 = arith.constant 0 : index
    %17 = vector.load %arg6[%c0_13, %c0_14] : memref<128x128xf32, #tpu.memory_space<vmem>>, vector<128x128xf32>
    tpu.vector_store %arg6[%c0_13, %c0_14], %16 {strides = array<i32>} : memref<128x128xf32, #tpu.memory_space<vmem>>, vector<128x128xf32>,
    %c0_i32_15 = arith.constant 0 : i32
    %18 = arith.cmpi eq, %arg1, %c0_i32_15 : i32
    %19 = arith.extui %18 : i1 to i32
    %c0_i32_16 = arith.constant 0 : i32
    %20 = arith.cmpi ne, %19, %c0_i32_16 : i32
    scf.if %20 {
      %c0_17 = arith.constant 0 : index
      %c0_18 = arith.constant 0 : index
      %21 = vector.load %arg7[%c0_17, %c0_18] : memref<128x1xf32, #tpu.memory_space<vmem>>, vector<128x1xf32>
      %cst_19 = arith.constant 9.99999996E-13 : f32
      %22 = vector.broadcast %cst_19 : f32 to vector<128x1xf32>
      %23 = arith.maximumf %21, %22 : vector<128x1xf32>
      %24 = tpu.reciprocal %23 {approx = true} : vector<128x1xf32> -> vector<128x1xf32>
      %25 = arith.mulf %23, %24 : vector<128x1xf32>
      %cst_20 = arith.constant 2.000000e+00 : f32
      %26 = vector.broadcast %cst_20 : f32 to vector<128x1xf32>
      %27 = arith.subf %26, %25 : vector<128x1xf32>
      %28 = arith.mulf %24, %27 : vector<128x1xf32>
      %c0_21 = arith.constant 0 : index
      %c0_22 = arith.constant 0 : index
      %29 = vector.load %arg6[%c0_21, %c0_22] : memref<128x128xf32, #tpu.memory_space<vmem>>, vector<128x128xf32>
      %30 = vector.broadcast %28 : vector<128x1xf32> to vector<128x128xf32>
      %31 = arith.mulf %29, %30 : vector<128x128xf32>
      %c0_23 = arith.constant 0 : index
      %c0_24 = arith.constant 0 : index
      %32 = vector.load %arg5[%c0_23, %c0_24] : memref<1x128xf32, #tpu.memory_space<vmem>>, vector<1x128xf32>
      %33 = vector.broadcast %32 : vector<1x128xf32> to vector<128x128xf32>
      %34 = arith.addf %31, %33 : vector<128x128xf32>
      %c0_25 = arith.constant 0 : index
      %c0_26 = arith.constant 0 : index
      %35 = vector.load %arg6[%c0_25, %c0_26] : memref<128x128xf32, #tpu.memory_space<vmem>>, vector<128x128xf32>
      tpu.vector_store %arg6[%c0_25, %c0_26], %34 {strides = array<i32>} : memref<128x128xf32, #tpu.memory_space<vmem>>, vector<128x128xf32>,
    } else {
    }
    return
  }
  func.func @transform_0(%arg0: i32, %arg1: i32) -> (i32, i32) {
    %c0_i32 = arith.constant 0 : i32
    return %arg0, %arg1 : i32, i32
  }
  func.func @transform_1(%arg0: i32, %arg1: i32) -> (i32, i32) {
    %c0_i32 = arith.constant 0 : i32
    return %arg0, %arg1 : i32, i32
  }
  func.func @transform_2(%arg0: i32, %arg1: i32) -> (i32, i32) {
    %c0_i32 = arith.constant 0 : i32
    %c0_i32_0 = arith.constant 0 : i32
    return %arg1, %c0_i32 : i32, i32
  }
  func.func @transform_3(%arg0: i32, %arg1: i32) -> (i32, i32) {
    %c0_i32 = arith.constant 0 : i32
    %c0_i32_0 = arith.constant 0 : i32
    %c0_i32_1 = arith.constant 0 : i32
    return %c0_i32, %c0_i32_0 : i32, i32
  }
  func.func @transform_4(%arg0: i32, %arg1: i32) -> (i32, i32) {
    %c0_i32 = arith.constant 0 : i32
    %c0_i32_0 = arith.constant 0 : i32
    return %arg0, %c0_i32 : i32, i32
  }
}

</mosaic_0001>

<llo_original>
// kernel: gcn_lpa_conv.2
$region0: #{gcn_lpa_conv.2}
  #allocation0 [shape = 'u32[]', space=smem, size = 0x4, offset = 0x4, fixed_abs, tag = 'smem constant byte address 0x4 - core index']
  #allocation1 [shape = 'u32[144,128]{1,0:T(1,128)}', space=vmem, size = 0x12000, scoped, tag = 'internal scratch']
  %s0 = inlined_call_operand.vmem [shape: f32[128,32], index: 0, kind: input, shape index: {}]
  %s1 = inlined_call_operand.vmem [shape: f32[32,128], index: 1, kind: input, shape index: {}]
  %s2 = inlined_call_operand.vmem [shape: f32[128,128], index: 2, kind: input, shape index: {}]
  %s3 = inlined_call_operand.vmem [shape: bf16[128,128], index: 3, kind: output, shape index: {}]
  %s4 = sld [smem:[#allocation0]]
  $region22: #{gcn_lpa_conv.2} parent=0
    _
  %s6 = ssub.s32 1, %s4
  %s7 = scalar_select 0, %s6, %s4
  // Predicated region
  $region2: #{gcn_lpa_conv.2} parent=0 // pred_check
    _
  $region3: #{gcn_lpa_conv.2} parent=0 // pred_check_branch
    %9 = sbr.rel (0) target = $region5
  $region4: #{gcn_lpa_conv.2} parent=0 // pred_region
    _
  $region5: #{gcn_lpa_conv.2} parent=0 // pred_fallthru
    _
  // Predicated region
  $region6: #{gcn_lpa_conv.2} parent=0 // pred_check
    _
  $region7: #{gcn_lpa_conv.2} parent=0 // pred_check_branch
    %11 = sbr.rel (0) target = $region9
  $region8: #{gcn_lpa_conv.2} parent=0 // pred_region
    _
  $region9: #{gcn_lpa_conv.2} parent=0 // pred_fallthru
    _
  // Predicated region
  $region10: #{gcn_lpa_conv.2} parent=0 // pred_check
    _
  $region11: #{gcn_lpa_conv.2} parent=0 // pred_check_branch
    %13 = sbr.rel (0) target = $region13
  $region12: #{gcn_lpa_conv.2} parent=0 // pred_region
    _
  $region13: #{gcn_lpa_conv.2} parent=0 // pred_fallthru
    _
  %v14 = vld [vmem:[%s0] sm:$0xff]
  %v15 = vld [vmem:[%s0 + $0x8] sm:$0xff]
  %v16 = vld [vmem:[%s0 + $0x10] sm:$0xff]
  %v17 = vld [vmem:[%s0 + $0x18] sm:$0xff]
  %v18 = vld [vmem:[%s0 + $0x20] sm:$0xff]
  %v19 = vld [vmem:[%s0 + $0x28] sm:$0xff]
  %v20 = vld [vmem:[%s0 + $0x30] sm:$0xff]
  %v21 = vld [vmem:[%s0 + $0x38] sm:$0xff]
  %v22 = vld [vmem:[%s0 + $0x40] sm:$0xff]
  %v23 = vld [vmem:[%s0 + $0x48] sm:$0xff]
  %v24 = vld [vmem:[%s0 + $0x50] sm:$0xff]
  %v25 = vld [vmem:[%s0 + $0x58] sm:$0xff]
  %v26 = vld [vmem:[%s0 + $0x60] sm:$0xff]
  %v27 = vld [vmem:[%s0 + $0x68] sm:$0xff]
  %v28 = vld [vmem:[%s0 + $0x70] sm:$0xff]
  %v29 = vld [vmem:[%s0 + $0x78] sm:$0xff]
  %v30 = vld [vmem:[%s1] sm:$0xff]
  %v31 = vld [vmem:[%s1 + $0x8] sm:$0xff]
  %v32 = vld [vmem:[%s1 + $0x10] sm:$0xff]
  %v33 = vld [vmem:[%s1 + $0x18] sm:$0xff]
  %v34 = vld [vmem:[%s2] sm:$0xff]
  %v35 = vld [vmem:[%s2 + $0x8] sm:$0xff]
  %v36 = vld [vmem:[%s2 + $0x10] sm:$0xff]
  %v37 = vld [vmem:[%s2 + $0x18] sm:$0xff]
  %v38 = vld [vmem:[%s2 + $0x20] sm:$0xff]
  %v39 = vld [vmem:[%s2 + $0x28] sm:$0xff]
  %v40 = vld [vmem:[%s2 + $0x30] sm:$0xff]
  %v41 = vld [vmem:[%s2 + $0x38] sm:$0xff]
  %v42 = vld [vmem:[%s2 + $0x40] sm:$0xff]
  %v43 = vld [vmem:[%s2 + $0x48] sm:$0xff]
  %v44 = vld [vmem:[%s2 + $0x50] sm:$0xff]
  %v45 = vld [vmem:[%s2 + $0x58] sm:$0xff]
  %v46 = vld [vmem:[%s2 + $0x60] sm:$0xff]
  %v47 = vld [vmem:[%s2 + $0x68] sm:$0xff]
  %v48 = vld [vmem:[%s2 + $0x70] sm:$0xff]
  %v49 = vld [vmem:[%s2 + $0x78] sm:$0xff]
  %vm50 = vcmask 261120
  %v52 = vsel %vm50, %v14, 0
  %v55 = vsel %vm50, %v15, 0
  %v58 = vsel %vm50, %v16, 0
  %v61 = vsel %vm50, %v17, 0
  %v64 = vsel %vm50, %v18, 0
  %v67 = vsel %vm50, %v19, 0
  %v70 = vsel %vm50, %v20, 0
  %v73 = vsel %vm50, %v21, 0
  %v76 = vsel %vm50, %v22, 0
  %v79 = vsel %vm50, %v23, 0
  %v82 = vsel %vm50, %v24, 0
  %v85 = vsel %vm50, %v25, 0
  %v88 = vsel %vm50, %v26, 0
  %v91 = vsel %vm50, %v27, 0
  %v94 = vsel %vm50, %v28, 0
  %v97 = vsel %vm50, %v29, 0
  %99 = vmatprep.subr.mxu0 0.0
  %100 = vmatpush1.msra.mxu0 %v30
  %101 = vmatprep.subr.mxu0 0.0
  %102 = vmatpush1.msra.mxu0 %v31
  %103 = vmatprep.subr.mxu0 0.0
  %104 = vmatpush1.msra.mxu0 %v32
  %105 = vmatprep.subr.mxu0 0.0
  %106 = vmatpush1.msra.mxu0 %v33
  %107 = vmatprep.subr.mxu0 0.0
  %108 = vmatpush1.msra.mxu0 0.0
  %109 = vmatprep.subr.mxu0 0.0
  %110 = vmatpush1.msra.mxu0 0.0
  %111 = vmatprep.subr.mxu0 0.0
  %112 = vmatpush1.msra.mxu0 0.0
  %113 = vmatprep.subr.mxu0 0.0
  %114 = vmatpush1.msra.mxu0 0.0
  %115 = vmatprep.subr.mxu0 0.0
  %116 = vmatpush1.msra.mxu0 0.0
  %117 = vmatprep.subr.mxu0 0.0
  %118 = vmatpush1.msra.mxu0 0.0
  %119 = vmatprep.subr.mxu0 0.0
  %120 = vmatpush1.msra.mxu0 0.0
  %121 = vmatprep.subr.mxu0 0.0
  %122 = vmatpush1.msra.mxu0 0.0
  %123 = vmatprep.subr.mxu0 0.0
  %124 = vmatpush1.msra.mxu0 0.0
  %125 = vmatprep.subr.mxu0 0.0
  %126 = vmatpush1.msra.mxu0 0.0
  %127 = vmatprep.subr.mxu0 0.0
  %128 = vmatpush1.msra.mxu0 0.0
  %129 = vmatprep.subr.mxu0 0.0
  %130 = vmatpush1.msra.mxu0 0.0
  %131 = vmatprep.subr.mxu0 0.0
  %132 = vmatpush1.msra.mxu0 0.0
  %133 = vmatprep.subr.mxu0 0.0
  %134 = vmatpush1.msra.mxu0 0.0
  %135 = vmatprep.subr.mxu0 0.0
  %136 = vmatpush1.msra.mxu0 0.0
  %137 = vmatprep.subr.mxu0 0.0
  %138 = vmatpush1.msra.mxu0 0.0
  %139 = vmatprep.subr.mxu0 0.0
  %140 = vmatpush1.msra.mxu0 0.0
  %141 = vmatprep.subr.mxu0 0.0
  %142 = vmatpush1.msra.mxu0 0.0
  %143 = vmatprep.subr.mxu0 0.0
  %144 = vmatpush1.msra.mxu0 0.0
  %145 = vmatprep.subr.mxu0 0.0
  %146 = vmatpush1.msra.mxu0 0.0
  %147 = vmatprep.subr.mxu0 0.0
  %148 = vmatpush1.msra.mxu0 0.0
  %149 = vmatprep.subr.mxu0 0.0
  %150 = vmatpush1.msra.mxu0 0.0
  %151 = vmatprep.subr.mxu0 0.0
  %152 = vmatpush1.msra.mxu0 0.0
  %153 = vmatprep.subr.mxu0 0.0
  %154 = vmatpush1.msra.mxu0 0.0
  %155 = vmatprep.subr.mxu0 0.0
  %156 = vmatpush1.msra.mxu0 0.0
  %157 = vmatprep.subr.mxu0 0.0
  %158 = vmatpush1.msra.mxu0 0.0
  %159 = vmatprep.subr.mxu0 0.0
  %160 = vmatpush1.msra.mxu0 0.0
  %161 = vmatprep.subr.mxu0 0.0
  %162 = vmatpush1.msra.mxu0 0.0
  %163 = vmatprep.mubr.f32.mxu0 0.0
  %164 = vmatmul.mubr.f32.gmra.mrb[0].mxu0 %v52
  %v165 = vpop.f32.mrb[0].mxu0
  %v166 = vadd.f32 %v34, %v165
  %v167 = vpop.f32.mrb[0].mxu0
  %168 = vmatprep.mubr.f32.mxu0 0.0
  %169 = vmatmul.mubr.f32.gmra.mrb[0].mxu0 %v55
  %v170 = vpop.f32.mrb[0].mxu0
  %v171 = vadd.f32 %v35, %v170
  %v172 = vpop.f32.mrb[0].mxu0
  %173 = vmatprep.mubr.f32.mxu0 0.0
  %174 = vmatmul.mubr.f32.gmra.mrb[0].mxu0 %v58
  %v175 = vpop.f32.mrb[0].mxu0
  %v176 = vadd.f32 %v36, %v175
  %v177 = vpop.f32.mrb[0].mxu0
  %178 = vmatprep.mubr.f32.mxu0 0.0
  %179 = vmatmul.mubr.f32.gmra.mrb[0].mxu0 %v61
  %v180 = vpop.f32.mrb[0].mxu0
  %v181 = vadd.f32 %v37, %v180
  %v182 = vpop.f32.mrb[0].mxu0
  %183 = vmatprep.mubr.f32.mxu0 0.0
  %184 = vmatmul.mubr.f32.gmra.mrb[0].mxu0 %v64
  %v185 = vpop.f32.mrb[0].mxu0
  %v186 = vadd.f32 %v38, %v185
  %v187 = vpop.f32.mrb[0].mxu0
  %188 = vmatprep.mubr.f32.mxu0 0.0
  %189 = vmatmul.mubr.f32.gmra.mrb[0].mxu0 %v67
  %v190 = vpop.f32.mrb[0].mxu0
  %v191 = vadd.f32 %v39, %v190
  %v192 = vpop.f32.mrb[0].mxu0
  %193 = vmatprep.mubr.f32.mxu0 0.0
  %194 = vmatmul.mubr.f32.gmra.mrb[0].mxu0 %v70
  %v195 = vpop.f32.mrb[0].mxu0
  %v196 = vadd.f32 %v40, %v195
  %v197 = vpop.f32.mrb[0].mxu0
  %198 = vmatprep.mubr.f32.mxu0 0.0
  %199 = vmatmul.mubr.f32.gmra.mrb[0].mxu0 %v73
  %v200 = vpop.f32.mrb[0].mxu0
  %v201 = vadd.f32 %v41, %v200
  %v202 = vpop.f32.mrb[0].mxu0
  %203 = vmatprep.mubr.f32.mxu0 0.0
  %204 = vmatmul.mubr.f32.gmra.mrb[0].mxu0 %v76
  %v205 = vpop.f32.mrb[0].mxu0
  %v206 = vadd.f32 %v42, %v205
  %v207 = vpop.f32.mrb[0].mxu0
  %208 = vmatprep.mubr.f32.mxu0 0.0
  %209 = vmatmul.mubr.f32.gmra.mrb[0].mxu0 %v79
  %v210 = vpop.f32.mrb[0].mxu0
  %v211 = vadd.f32 %v43, %v210
  %v212 = vpop.f32.mrb[0].mxu0
  %213 = vmatprep.mubr.f32.mxu0 0.0
  %214 = vmatmul.mubr.f32.gmra.mrb[0].mxu0 %v82
  %v215 = vpop.f32.mrb[0].mxu0
  %v216 = vadd.f32 %v44, %v215
  %v217 = vpop.f32.mrb[0].mxu0
  %218 = vmatprep.mubr.f32.mxu0 0.0
  %219 = vmatmul.mubr.f32.gmra.mrb[0].mxu0 %v85
  %v220 = vpop.f32.mrb[0].mxu0
  %v221 = vadd.f32 %v45, %v220
  %v222 = vpop.f32.mrb[0].mxu0
  %223 = vmatprep.mubr.f32.mxu0 0.0
  %224 = vmatmul.mubr.f32.gmra.mrb[0].mxu0 %v88
  %v225 = vpop.f32.mrb[0].mxu0
  %v226 = vadd.f32 %v46, %v225
  %v227 = vpop.f32.mrb[0].mxu0
  %228 = vmatprep.mubr.f32.mxu0 0.0
  %229 = vmatmul.mubr.f32.gmra.mrb[0].mxu0 %v91
  %v230 = vpop.f32.mrb[0].mxu0
  %v231 = vadd.f32 %v47, %v230
  %v232 = vpop.f32.mrb[0].mxu0
  %233 = vmatprep.mubr.f32.mxu0 0.0
  %234 = vmatmul.mubr.f32.gmra.mrb[0].mxu0 %v94
  %v235 = vpop.f32.mrb[0].mxu0
  %v236 = vadd.f32 %v48, %v235
  %v237 = vpop.f32.mrb[0].mxu0
  %238 = vmatprep.mubr.f32.mxu0 0.0
  %239 = vmatmul.mubr.f32.gmra.mrb[0].mxu0 %v97
  %v240 = vpop.f32.mrb[0].mxu0
  %v241 = vadd.f32 %v49, %v240
  %v242 = vpop.f32.mrb[0].mxu0
  %243 = vdwg.mxu0
  %v244 = vpack.c.bf16 %v171, %v166
  %v245 = vpack.c.bf16 %v181, %v176
  %v246 = vpack.c.bf16 %v191, %v186
  %v247 = vpack.c.bf16 %v201, %v196
  %v248 = vpack.c.bf16 %v211, %v206
  %v249 = vpack.c.bf16 %v221, %v216
  %v250 = vpack.c.bf16 %v231, %v226
  %v251 = vpack.c.bf16 %v241, %v236
  %v260 = vunpack.c.l.b16 %v244
  %v261 = vunpack.c.h.b16 %v244
  %v262 = vunpack.c.l.b16 %v245
  %v263 = vunpack.c.h.b16 %v245
  %v264 = vunpack.c.l.b16 %v246
  %v265 = vunpack.c.h.b16 %v246
  %v266 = vunpack.c.l.b16 %v247
  %v267 = vunpack.c.h.b16 %v247
  %v268 = vunpack.c.l.b16 %v248
  %v269 = vunpack.c.h.b16 %v248
  %v270 = vunpack.c.l.b16 %v249
  %v271 = vunpack.c.h.b16 %v249
  %v272 = vunpack.c.l.b16 %v250
  %v273 = vunpack.c.h.b16 %v250
  %v274 = vunpack.c.l.b16 %v251
  %v275 = vunpack.c.h.b16 %v251
  %v276 = vpack.c.b16 %v260, %v260
  %v277 = vpack.c.b16 %v261, %v261
  %v278 = vpack.c.b16 %v262, %v262
  %v279 = vpack.c.b16 %v263, %v263
  %v280 = vpack.c.b16 %v264, %v264
  %v281 = vpack.c.b16 %v265, %v265
  %v282 = vpack.c.b16 %v266, %v266
  %v283 = vpack.c.b16 %v267, %v267
  %v284 = vpack.c.b16 %v268, %v268
  %v285 = vpack.c.b16 %v269, %v269
  %v286 = vpack.c.b16 %v270, %v270
  %v287 = vpack.c.b16 %v271, %v271
  %v288 = vpack.c.b16 %v272, %v272
  %v289 = vpack.c.b16 %v273, %v273
  %v290 = vpack.c.b16 %v274, %v274
  %v291 = vpack.c.b16 %v275, %v275
  %308 = vst [vmem:[%s3] sm:$0xf] %v276
  %309 = vst [vmem:[%s3 + $0x4] sm:$0xf] %v277
  %310 = vst [vmem:[%s3 + $0x8] sm:$0xf] %v278
  %311 = vst [vmem:[%s3 + $0xc] sm:$0xf] %v279
  %312 = vst [vmem:[%s3 + $0x10] sm:$0xf] %v280
  %313 = vst [vmem:[%s3 + $0x14] sm:$0xf] %v281
  %314 = vst [vmem:[%s3 + $0x18] sm:$0xf] %v282
  %315 = vst [vmem:[%s3 + $0x1c] sm:$0xf] %v283
  %316 = vst [vmem:[%s3 + $0x20] sm:$0xf] %v284
  %317 = vst [vmem:[%s3 + $0x24] sm:$0xf] %v285
  %318 = vst [vmem:[%s3 + $0x28] sm:$0xf] %v286
  %319 = vst [vmem:[%s3 + $0x2c] sm:$0xf] %v287
  %320 = vst [vmem:[%s3 + $0x30] sm:$0xf] %v288
  %321 = vst [vmem:[%s3 + $0x34] sm:$0xf] %v289
  %322 = vst [vmem:[%s3 + $0x38] sm:$0xf] %v290
  %323 = vst [vmem:[%s3 + $0x3c] sm:$0xf] %v291
  // Predicated region
  $region14: #{gcn_lpa_conv.2} parent=0 // pred_check
    _
  $region15: #{gcn_lpa_conv.2} parent=0 // pred_check_branch
    %325 = sbr.rel (0) target = $region17
  $region16: #{gcn_lpa_conv.2} parent=0 // pred_region
    _
  $region17: #{gcn_lpa_conv.2} parent=0 // pred_fallthru
    _
  // Predicated region
  $region18: #{gcn_lpa_conv.2} parent=0 // pred_check
    _
  $region19: #{gcn_lpa_conv.2} parent=0 // pred_check_branch
    %327 = sbr.rel (0) target = $region21
  $region20: #{gcn_lpa_conv.2} parent=0 // pred_region
    _
  $region21: #{gcn_lpa_conv.2} parent=0 // pred_fallthru
    _

// kernel: gcn_lpa_conv.3
$region0: #{gcn_lpa_conv.3}
  #allocation0 [shape = 'u32[]', space=smem, size = 0x4, offset = 0x4, fixed_abs, tag = 'smem constant byte address 0x4 - core index']
  #allocation1 [shape = 'u32[144,128]{1,0:T(1,128)}', space=vmem, size = 0x12000, scoped, tag = 'internal scratch']
  #allocation2 [shape = 'f32[128,1]{1,0:T(8,128)}', space=vmem, size = 0x10000, scoped, tag = 'scratch operand']
  %s0 = inlined_call_operand.vmem [shape: f32[128,128], index: 0, kind: input, shape index: {}]
  %s1 = inlined_call_operand.vmem [shape: f32[128,128], index: 1, kind: input, shape index: {}]
  %s2 = inlined_call_operand.vmem [shape: bf16[128,128], index: 2, kind: input, shape index: {}]
  %s3 = inlined_call_operand.vmem [shape: f32[1,128], index: 3, kind: input, shape index: {}]
  %s4 = inlined_call_operand.vmem [shape: f32[128,128], index: 4, kind: output, shape index: {}]
  %s5 = sld [smem:[#allocation0]]
  $region34: #{gcn_lpa_conv.3} parent=0
    _
  %s7 = ssub.s32 1, %s5
  %s8 = scalar_select 0, %s7, %s5
  // Predicated region
  $region2: #{gcn_lpa_conv.3} parent=0 // pred_check
    _
  $region3: #{gcn_lpa_conv.3} parent=0 // pred_check_branch
    %10 = sbr.rel (0) target = $region5
  $region4: #{gcn_lpa_conv.3} parent=0 // pred_region
    _
  $region5: #{gcn_lpa_conv.3} parent=0 // pred_fallthru
    _
  // Predicated region
  $region6: #{gcn_lpa_conv.3} parent=0 // pred_check
    _
  $region7: #{gcn_lpa_conv.3} parent=0 // pred_check_branch
    %12 = sbr.rel (0) target = $region9
  $region8: #{gcn_lpa_conv.3} parent=0 // pred_region
    _
  $region9: #{gcn_lpa_conv.3} parent=0 // pred_fallthru
    _
  // Predicated region
  $region10: #{gcn_lpa_conv.3} parent=0 // pred_check
    _
  $region11: #{gcn_lpa_conv.3} parent=0 // pred_check_branch
    %14 = sbr.rel (0) target = $region13
  $region12: #{gcn_lpa_conv.3} parent=0 // pred_region
    _
  $region13: #{gcn_lpa_conv.3} parent=0 // pred_fallthru
    _
  // Predicated region
  $region14: #{gcn_lpa_conv.3} parent=0 // pred_check
    _
  $region15: #{gcn_lpa_conv.3} parent=0 // pred_check_branch
    %16 = sbr.rel (0) target = $region17
  $region16: #{gcn_lpa_conv.3} parent=0 // pred_region
    _
  $region17: #{gcn_lpa_conv.3} parent=0 // pred_fallthru
    _
  %p18 = scmp.eq.s32.totalorder 0, 0
  // Predicated region
  $region18: #{gcn_lpa_conv.3} parent=0 // pred_check
    %p19 = pneg %p18
  $region19: #{gcn_lpa_conv.3} parent=0 // pred_check_branch
    %21 = sbr.rel (%p19) target = $region21
  $region20: #{gcn_lpa_conv.3} parent=0 // pred_region
    %22 = vst [vmem:[%s4] sm:$0xff] 0.0
    %23 = vst [vmem:[%s4 + $0x8] sm:$0xff] 0.0
    %24 = vst [vmem:[%s4 + $0x10] sm:$0xff] 0.0
    %25 = vst [vmem:[%s4 + $0x18] sm:$0xff] 0.0
    %26 = vst [vmem:[%s4 + $0x20] sm:$0xff] 0.0
    %27 = vst [vmem:[%s4 + $0x28] sm:$0xff] 0.0
    %28 = vst [vmem:[%s4 + $0x30] sm:$0xff] 0.0
    %29 = vst [vmem:[%s4 + $0x38] sm:$0xff] 0.0
    %30 = vst [vmem:[%s4 + $0x40] sm:$0xff] 0.0
    %31 = vst [vmem:[%s4 + $0x48] sm:$0xff] 0.0
    %32 = vst [vmem:[%s4 + $0x50] sm:$0xff] 0.0
    %33 = vst [vmem:[%s4 + $0x58] sm:$0xff] 0.0
    %34 = vst [vmem:[%s4 + $0x60] sm:$0xff] 0.0
    %35 = vst [vmem:[%s4 + $0x68] sm:$0xff] 0.0
    %36 = vst [vmem:[%s4 + $0x70] sm:$0xff] 0.0
    %37 = vst [vmem:[%s4 + $0x78] sm:$0xff] 0.0
    %vm38 = vcmask 7168
    %39 = vst.msk [vmem:[#allocation2] sm:$0xff] %vm38, 0.0
    %40 = vst.msk [vmem:[#allocation2 + $0x8] sm:$0xff] %vm38, 0.0
    %41 = vst.msk [vmem:[#allocation2 + $0x10] sm:$0xff] %vm38, 0.0
    %42 = vst.msk [vmem:[#allocation2 + $0x18] sm:$0xff] %vm38, 0.0
    %43 = vst.msk [vmem:[#allocation2 + $0x20] sm:$0xff] %vm38, 0.0
    %44 = vst.msk [vmem:[#allocation2 + $0x28] sm:$0xff] %vm38, 0.0
    %45 = vst.msk [vmem:[#allocation2 + $0x30] sm:$0xff] %vm38, 0.0
    %46 = vst.msk [vmem:[#allocation2 + $0x38] sm:$0xff] %vm38, 0.0
    %47 = vst.msk [vmem:[#allocation2 + $0x40] sm:$0xff] %vm38, 0.0
    %48 = vst.msk [vmem:[#allocation2 + $0x48] sm:$0xff] %vm38, 0.0
    %49 = vst.msk [vmem:[#allocation2 + $0x50] sm:$0xff] %vm38, 0.0
    %50 = vst.msk [vmem:[#allocation2 + $0x58] sm:$0xff] %vm38, 0.0
    %51 = vst.msk [vmem:[#allocation2 + $0x60] sm:$0xff] %vm38, 0.0
    %52 = vst.msk [vmem:[#allocation2 + $0x68] sm:$0xff] %vm38, 0.0
    %53 = vst.msk [vmem:[#allocation2 + $0x70] sm:$0xff] %vm38, 0.0
    %54 = vst.msk [vmem:[#allocation2 + $0x78] sm:$0xff] %vm38, 0.0
  $region21: #{gcn_lpa_conv.3} parent=0 // pred_fallthru
    _
  %v55 = vld [vmem:[%s0] sm:$0xff]
  %v56 = vld [vmem:[%s0 + $0x8] sm:$0xff]
  %v57 = vld [vmem:[%s0 + $0x10] sm:$0xff]
  %v58 = vld [vmem:[%s0 + $0x18] sm:$0xff]
  %v59 = vld [vmem:[%s0 + $0x20] sm:$0xff]
  %v60 = vld [vmem:[%s0 + $0x28] sm:$0xff]
  %v61 = vld [vmem:[%s0 + $0x30] sm:$0xff]
  %v62 = vld [vmem:[%s0 + $0x38] sm:$0xff]
  %v63 = vld [vmem:[%s0 + $0x40] sm:$0xff]
  %v64 = vld [vmem:[%s0 + $0x48] sm:$0xff]
  %v65 = vld [vmem:[%s0 + $0x50] sm:$0xff]
  %v66 = vld [vmem:[%s0 + $0x58] sm:$0xff]
  %v67 = vld [vmem:[%s0 + $0x60] sm:$0xff]
  %v68 = vld [vmem:[%s0 + $0x68] sm:$0xff]
  %v69 = vld [vmem:[%s0 + $0x70] sm:$0xff]
  %v70 = vld [vmem:[%s0 + $0x78] sm:$0xff]
  %v71 = vld [vmem:[%s1] sm:$0xff]
  %v72 = vld [vmem:[%s1 + $0x8] sm:$0xff]
  %v73 = vld [vmem:[%s1 + $0x10] sm:$0xff]
  %v74 = vld [vmem:[%s1 + $0x18] sm:$0xff]
  %v75 = vld [vmem:[%s1 + $0x20] sm:$0xff]
  %v76 = vld [vmem:[%s1 + $0x28] sm:$0xff]
  %v77 = vld [vmem:[%s1 + $0x30] sm:$0xff]
  %v78 = vld [vmem:[%s1 + $0x38] sm:$0xff]
  %v79 = vld [vmem:[%s1 + $0x40] sm:$0xff]
  %v80 = vld [vmem:[%s1 + $0x48] sm:$0xff]
  %v81 = vld [vmem:[%s1 + $0x50] sm:$0xff]
  %v82 = vld [vmem:[%s1 + $0x58] sm:$0xff]
  %v83 = vld [vmem:[%s1 + $0x60] sm:$0xff]
  %v84 = vld [vmem:[%s1 + $0x68] sm:$0xff]
  %v85 = vld [vmem:[%s1 + $0x70] sm:$0xff]
  %v86 = vld [vmem:[%s1 + $0x78] sm:$0xff]
  %v87 = vmul.f32 %v55, %v71
  %v88 = vmul.f32 %v56, %v72
  %v89 = vmul.f32 %v57, %v73
  %v90 = vmul.f32 %v58, %v74
  %v91 = vmul.f32 %v59, %v75
  %v92 = vmul.f32 %v60, %v76
  %v93 = vmul.f32 %v61, %v77
  %v94 = vmul.f32 %v62, %v78
  %v95 = vmul.f32 %v63, %v79
  %v96 = vmul.f32 %v64, %v80
  %v97 = vmul.f32 %v65, %v81
  %v98 = vmul.f32 %v66, %v82
  %v99 = vmul.f32 %v67, %v83
  %v100 = vmul.f32 %v68, %v84
  %v101 = vmul.f32 %v69, %v85
  %v102 = vmul.f32 %v70, %v86
  %v103 = vld [vmem:[#allocation2] sm:$0xff]
  %v104 = vld [vmem:[#allocation2 + $0x8] sm:$0xff]
  %v105 = vld [vmem:[#allocation2 + $0x10] sm:$0xff]
  %v106 = vld [vmem:[#allocation2 + $0x18] sm:$0xff]
  %v107 = vld [vmem:[#allocation2 + $0x20] sm:$0xff]
  %v108 = vld [vmem:[#allocation2 + $0x28] sm:$0xff]
  %v109 = vld [vmem:[#allocation2 + $0x30] sm:$0xff]
  %v110 = vld [vmem:[#allocation2 + $0x38] sm:$0xff]
  %v111 = vld [vmem:[#allocation2 + $0x40] sm:$0xff]
  %v112 = vld [vmem:[#allocation2 + $0x48] sm:$0xff]
  %v113 = vld [vmem:[#allocation2 + $0x50] sm:$0xff]
  %v114 = vld [vmem:[#allocation2 + $0x58] sm:$0xff]
  %v115 = vld [vmem:[#allocation2 + $0x60] sm:$0xff]
  %v116 = vld [vmem:[#allocation2 + $0x68] sm:$0xff]
  %v117 = vld [vmem:[#allocation2 + $0x70] sm:$0xff]
  %v118 = vld [vmem:[#allocation2 + $0x78] sm:$0xff]
  %v119 = vand.u32 2147483647, %v87
  %v120 = vand.u32 2147483647, %v88
  %v121 = vand.u32 2147483647, %v89
  %v122 = vand.u32 2147483647, %v90
  %v123 = vand.u32 2147483647, %v91
  %v124 = vand.u32 2147483647, %v92
  %v125 = vand.u32 2147483647, %v93
  %v126 = vand.u32 2147483647, %v94
  %v127 = vand.u32 2147483647, %v95
  %v128 = vand.u32 2147483647, %v96
  %v129 = vand.u32 2147483647, %v97
  %v130 = vand.u32 2147483647, %v98
  %v131 = vand.u32 2147483647, %v99
  %v132 = vand.u32 2147483647, %v100
  %v133 = vand.u32 2147483647, %v101
  %v134 = vand.u32 2147483647, %v102
  %135 = vadd.xlane.f32.xlu0 %v119
  %v136 = vpop.xlane.xlu0 %135
  %137 = vadd.xlane.f32.xlu0 %v120
  %v138 = vpop.xlane.xlu0 %137
  %139 = vadd.xlane.f32.xlu0 %v121
  %v140 = vpop.xlane.xlu0 %139
  %141 = vadd.xlane.f32.xlu0 %v122
  %v142 = vpop.xlane.xlu0 %141
  %143 = vadd.xlane.f32.xlu0 %v123
  %v144 = vpop.xlane.xlu0 %143
  %145 = vadd.xlane.f32.xlu0 %v124
  %v146 = vpop.xlane.xlu0 %145
  %147 = vadd.xlane.f32.xlu0 %v125
  %v148 = vpop.xlane.xlu0 %147
  %149 = vadd.xlane.f32.xlu0 %v126
  %v150 = vpop.xlane.xlu0 %149
  %151 = vadd.xlane.f32.xlu0 %v127
  %v152 = vpop.xlane.xlu0 %151
  %153 = vadd.xlane.f32.xlu0 %v128
  %v154 = vpop.xlane.xlu0 %153
  %155 = vadd.xlane.f32.xlu0 %v129
  %v156 = vpop.xlane.xlu0 %155
  %157 = vadd.xlane.f32.xlu0 %v130
  %v158 = vpop.xlane.xlu0 %157
  %159 = vadd.xlane.f32.xlu0 %v131
  %v160 = vpop.xlane.xlu0 %159
  %161 = vadd.xlane.f32.xlu0 %v132
  %v162 = vpop.xlane.xlu0 %161
  %163 = vadd.xlane.f32.xlu0 %v133
  %v164 = vpop.xlane.xlu0 %163
  %165 = vadd.xlane.f32.xlu0 %v134
  %v166 = vpop.xlane.xlu0 %165
  %v167 = vadd.f32 %v103, %v136
  %v168 = vadd.f32 %v104, %v138
  %v169 = vadd.f32 %v105, %v140
  %v170 = vadd.f32 %v106, %v142
  %v171 = vadd.f32 %v107, %v144
  %v172 = vadd.f32 %v108, %v146
  %v173 = vadd.f32 %v109, %v148
  %v174 = vadd.f32 %v110, %v150
  %v175 = vadd.f32 %v111, %v152
  %v176 = vadd.f32 %v112, %v154
  %v177 = vadd.f32 %v113, %v156
  %v178 = vadd.f32 %v114, %v158
  %v179 = vadd.f32 %v115, %v160
  %v180 = vadd.f32 %v116, %v162
  %v181 = vadd.f32 %v117, %v164
  %v182 = vadd.f32 %v118, %v166
  %vm183 = vcmask 7168
  %184 = vst.msk [vmem:[#allocation2] sm:$0xff] %vm183, %v167
  %185 = vst.msk [vmem:[#allocation2 + $0x8] sm:$0xff] %vm183, %v168
  %186 = vst.msk [vmem:[#allocation2 + $0x10] sm:$0xff] %vm183, %v169
  %187 = vst.msk [vmem:[#allocation2 + $0x18] sm:$0xff] %vm183, %v170
  %188 = vst.msk [vmem:[#allocation2 + $0x20] sm:$0xff] %vm183, %v171
  %189 = vst.msk [vmem:[#allocation2 + $0x28] sm:$0xff] %vm183, %v172
  %190 = vst.msk [vmem:[#allocation2 + $0x30] sm:$0xff] %vm183, %v173
  %191 = vst.msk [vmem:[#allocation2 + $0x38] sm:$0xff] %vm183, %v174
  %192 = vst.msk [vmem:[#allocation2 + $0x40] sm:$0xff] %vm183, %v175
  %193 = vst.msk [vmem:[#allocation2 + $0x48] sm:$0xff] %vm183, %v176
  %194 = vst.msk [vmem:[#allocation2 + $0x50] sm:$0xff] %vm183, %v177
  %195 = vst.msk [vmem:[#allocation2 + $0x58] sm:$0xff] %vm183, %v178
  %196 = vst.msk [vmem:[#allocation2 + $0x60] sm:$0xff] %vm183, %v179
  %197 = vst.msk [vmem:[#allocation2 + $0x68] sm:$0xff] %vm183, %v180
  %198 = vst.msk [vmem:[#allocation2 + $0x70] sm:$0xff] %vm183, %v181
  %199 = vst.msk [vmem:[#allocation2 + $0x78] sm:$0xff] %vm183, %v182
  %v200 = vld [vmem:[%s4] sm:$0xff]
  %v201 = vld [vmem:[%s4 + $0x8] sm:$0xff]
  %v202 = vld [vmem:[%s4 + $0x10] sm:$0xff]
  %v203 = vld [vmem:[%s4 + $0x18] sm:$0xff]
  %v204 = vld [vmem:[%s4 + $0x20] sm:$0xff]
  %v205 = vld [vmem:[%s4 + $0x28] sm:$0xff]
  %v206 = vld [vmem:[%s4 + $0x30] sm:$0xff]
  %v207 = vld [vmem:[%s4 + $0x38] sm:$0xff]
  %v208 = vld [vmem:[%s4 + $0x40] sm:$0xff]
  %v209 = vld [vmem:[%s4 + $0x48] sm:$0xff]
  %v210 = vld [vmem:[%s4 + $0x50] sm:$0xff]
  %v211 = vld [vmem:[%s4 + $0x58] sm:$0xff]
  %v212 = vld [vmem:[%s4 + $0x60] sm:$0xff]
  %v213 = vld [vmem:[%s4 + $0x68] sm:$0xff]
  %v214 = vld [vmem:[%s4 + $0x70] sm:$0xff]
  %v215 = vld [vmem:[%s4 + $0x78] sm:$0xff]
  %v216 = vpack.c.bf16 %v88, %v87
  %v217 = vpack.c.bf16 %v90, %v89
  %v218 = vpack.c.bf16 %v92, %v91
  %v219 = vpack.c.bf16 %v94, %v93
  %v220 = vpack.c.bf16 %v96, %v95
  %v221 = vpack.c.bf16 %v98, %v97
  %v222 = vpack.c.bf16 %v100, %v99
  %v223 = vpack.c.bf16 %v102, %v101
  %v224 = vld [vmem:[%s2] sm:$0xf]
  %v225 = vld [vmem:[%s2 + $0x4] sm:$0xf]
  %v226 = vld [vmem:[%s2 + $0x8] sm:$0xf]
  %v227 = vld [vmem:[%s2 + $0xc] sm:$0xf]
  %v228 = vld [vmem:[%s2 + $0x10] sm:$0xf]
  %v229 = vld [vmem:[%s2 + $0x14] sm:$0xf]
  %v230 = vld [vmem:[%s2 + $0x18] sm:$0xf]
  %v231 = vld [vmem:[%s2 + $0x1c] sm:$0xf]
  %v232 = vld [vmem:[%s2 + $0x20] sm:$0xf]
  %v233 = vld [vmem:[%s2 + $0x24] sm:$0xf]
  %v234 = vld [vmem:[%s2 + $0x28] sm:$0xf]
  %v235 = vld [vmem:[%s2 + $0x2c] sm:$0xf]
  %v236 = vld [vmem:[%s2 + $0x30] sm:$0xf]
  %v237 = vld [vmem:[%s2 + $0x34] sm:$0xf]
  %v238 = vld [vmem:[%s2 + $0x38] sm:$0xf]
  %v239 = vld [vmem:[%s2 + $0x3c] sm:$0xf]
  %v256 = vunpack.c.l.b16 %v224
  %v257 = vunpack.c.l.b16 %v225
  %v258 = vunpack.c.l.b16 %v226
  %v259 = vunpack.c.l.b16 %v227
  %v260 = vunpack.c.l.b16 %v228
  %v261 = vunpack.c.l.b16 %v229
  %v262 = vunpack.c.l.b16 %v230
  %v263 = vunpack.c.l.b16 %v231
  %v264 = vunpack.c.l.b16 %v232
  %v265 = vunpack.c.l.b16 %v233
  %v266 = vunpack.c.l.b16 %v234
  %v267 = vunpack.c.l.b16 %v235
  %v268 = vunpack.c.l.b16 %v236
  %v269 = vunpack.c.l.b16 %v237
  %v270 = vunpack.c.l.b16 %v238
  %v271 = vunpack.c.l.b16 %v239
  %v272 = vpack.c.b16 %v257, %v256
  %v273 = vpack.c.b16 %v259, %v258
  %v274 = vpack.c.b16 %v261, %v260
  %v275 = vpack.c.b16 %v263, %v262
  %v276 = vpack.c.b16 %v265, %v264
  %v277 = vpack.c.b16 %v267, %v266
  %v278 = vpack.c.b16 %v269, %v268
  %v279 = vpack.c.b16 %v271, %v270
  %288 = vmatprep.subr.bf16.mxu0 0
  %289 = vmatpush1.bf16.msra.mxu0 %v272
  %290 = vmatprep.subr.bf16.mxu0 0
  %291 = vmatpush1.bf16.msra.mxu0 %v273
  %292 = vmatprep.subr.bf16.mxu0 0
  %293 = vmatpush1.bf16.msra.mxu0 %v274
  %294 = vmatprep.subr.bf16.mxu0 0
  %295 = vmatpush1.bf16.msra.mxu0 %v275
  %296 = vmatprep.subr.bf16.mxu0 0
  %297 = vmatpush1.bf16.msra.mxu0 %v276
  %298 = vmatprep.subr.bf16.mxu0 0
  %299 = vmatpush1.bf16.msra.mxu0 %v277
  %300 = vmatprep.subr.bf16.mxu0 0
  %301 = vmatpush1.bf16.msra.mxu0 %v278
  %302 = vmatprep.subr.bf16.mxu0 0
  %303 = vmatpush1.bf16.msra.mxu0 %v279
  %304 = vmatprep.subr.bf16.mxu0 0
  %305 = vmatpush1.bf16.msra.mxu0 0
  %306 = vmatprep.subr.bf16.mxu0 0
  %307 = vmatpush1.bf16.msra.mxu0 0
  %308 = vmatprep.subr.bf16.mxu0 0
  %309 = vmatpush1.bf16.msra.mxu0 0
  %310 = vmatprep.subr.bf16.mxu0 0
  %311 = vmatpush1.bf16.msra.mxu0 0
  %312 = vmatprep.subr.bf16.mxu0 0
  %313 = vmatpush1.bf16.msra.mxu0 0
  %314 = vmatprep.subr.bf16.mxu0 0
  %315 = vmatpush1.bf16.msra.mxu0 0
  %316 = vmatprep.subr.bf16.mxu0 0
  %317 = vmatpush1.bf16.msra.mxu0 0
  %318 = vmatprep.subr.bf16.mxu0 0
  %319 = vmatpush1.bf16.msra.mxu0 0
  %320 = vmatprep.mubr.bf16.mxu0 0
  %321 = vmatmul.mubr.bf16.gmra.mrb[0].mxu0 %v216
  %v322 = vpop.f32.mrb[0].mxu0
  %v323 = vadd.f32 0.0, %v322
  %v324 = vpop.f32.mrb[0].mxu0
  %v325 = vpop.f32.mrb[0].mxu0
  %v326 = vadd.f32 0.0, %v325
  %v327 = vpop.f32.mrb[0].mxu0
  %328 = vmatprep.mubr.bf16.mxu0 0
  %329 = vmatmul.mubr.bf16.gmra.mrb[0].mxu0 %v217
  %v330 = vpop.f32.mrb[0].mxu0
  %v331 = vadd.f32 0.0, %v330
  %v332 = vpop.f32.mrb[0].mxu0
  %v333 = vpop.f32.mrb[0].mxu0
  %v334 = vadd.f32 0.0, %v333
  %v335 = vpop.f32.mrb[0].mxu0
  %336 = vmatprep.mubr.bf16.mxu0 0
  %337 = vmatmul.mubr.bf16.gmra.mrb[0].mxu0 %v218
  %v338 = vpop.f32.mrb[0].mxu0
  %v339 = vadd.f32 0.0, %v338
  %v340 = vpop.f32.mrb[0].mxu0
  %v341 = vpop.f32.mrb[0].mxu0
  %v342 = vadd.f32 0.0, %v341
  %v343 = vpop.f32.mrb[0].mxu0
  %344 = vmatprep.mubr.bf16.mxu0 0
  %345 = vmatmul.mubr.bf16.gmra.mrb[0].mxu0 %v219
  %v346 = vpop.f32.mrb[0].mxu0
  %v347 = vadd.f32 0.0, %v346
  %v348 = vpop.f32.mrb[0].mxu0
  %v349 = vpop.f32.mrb[0].mxu0
  %v350 = vadd.f32 0.0, %v349
  %v351 = vpop.f32.mrb[0].mxu0
  %352 = vmatprep.mubr.bf16.mxu0 0
  %353 = vmatmul.mubr.bf16.gmra.mrb[0].mxu0 %v220
  %v354 = vpop.f32.mrb[0].mxu0
  %v355 = vadd.f32 0.0, %v354
  %v356 = vpop.f32.mrb[0].mxu0
  %v357 = vpop.f32.mrb[0].mxu0
  %v358 = vadd.f32 0.0, %v357
  %v359 = vpop.f32.mrb[0].mxu0
  %360 = vmatprep.mubr.bf16.mxu0 0
  %361 = vmatmul.mubr.bf16.gmra.mrb[0].mxu0 %v221
  %v362 = vpop.f32.mrb[0].mxu0
  %v363 = vadd.f32 0.0, %v362
  %v364 = vpop.f32.mrb[0].mxu0
  %v365 = vpop.f32.mrb[0].mxu0
  %v366 = vadd.f32 0.0, %v365
  %v367 = vpop.f32.mrb[0].mxu0
  %368 = vmatprep.mubr.bf16.mxu0 0
  %369 = vmatmul.mubr.bf16.gmra.mrb[0].mxu0 %v222
  %v370 = vpop.f32.mrb[0].mxu0
  %v371 = vadd.f32 0.0, %v370
  %v372 = vpop.f32.mrb[0].mxu0
  %v373 = vpop.f32.mrb[0].mxu0
  %v374 = vadd.f32 0.0, %v373
  %v375 = vpop.f32.mrb[0].mxu0
  %376 = vmatprep.mubr.bf16.mxu0 0
  %377 = vmatmul.mubr.bf16.gmra.mrb[0].mxu0 %v223
  %v378 = vpop.f32.mrb[0].mxu0
  %v379 = vadd.f32 0.0, %v378
  %v380 = vpop.f32.mrb[0].mxu0
  %v381 = vpop.f32.mrb[0].mxu0
  %v382 = vadd.f32 0.0, %v381
  %v383 = vpop.f32.mrb[0].mxu0
  %384 = vdwg.mxu0
  %v385 = vadd.f32 %v200, %v323
  %v386 = vadd.f32 %v201, %v326
  %v387 = vadd.f32 %v202, %v331
  %v388 = vadd.f32 %v203, %v334
  %v389 = vadd.f32 %v204, %v339
  %v390 = vadd.f32 %v205, %v342
  %v391 = vadd.f32 %v206, %v347
  %v392 = vadd.f32 %v207, %v350
  %v393 = vadd.f32 %v208, %v355
  %v394 = vadd.f32 %v209, %v358
  %v395 = vadd.f32 %v210, %v363
  %v396 = vadd.f32 %v211, %v366
  %v397 = vadd.f32 %v212, %v371
  %v398 = vadd.f32 %v213, %v374
  %v399 = vadd.f32 %v214, %v379
  %v400 = vadd.f32 %v215, %v382
  %401 = vst [vmem:[%s4] sm:$0xff] %v385
  %402 = vst [vmem:[%s4 + $0x8] sm:$0xff] %v386
  %403 = vst [vmem:[%s4 + $0x10] sm:$0xff] %v387
  %404 = vst [vmem:[%s4 + $0x18] sm:$0xff] %v388
  %405 = vst [vmem:[%s4 + $0x20] sm:$0xff] %v389
  %406 = vst [vmem:[%s4 + $0x28] sm:$0xff] %v390
  %407 = vst [vmem:[%s4 + $0x30] sm:$0xff] %v391
  %408 = vst [vmem:[%s4 + $0x38] sm:$0xff] %v392
  %409 = vst [vmem:[%s4 + $0x40] sm:$0xff] %v393
  %410 = vst [vmem:[%s4 + $0x48] sm:$0xff] %v394
  %411 = vst [vmem:[%s4 + $0x50] sm:$0xff] %v395
  %412 = vst [vmem:[%s4 + $0x58] sm:$0xff] %v396
  %413 = vst [vmem:[%s4 + $0x60] sm:$0xff] %v397
  %414 = vst [vmem:[%s4 + $0x68] sm:$0xff] %v398
  %415 = vst [vmem:[%s4 + $0x70] sm:$0xff] %v399
  %416 = vst [vmem:[%s4 + $0x78] sm:$0xff] %v400
  // Predicated region
  $region22: #{gcn_lpa_conv.3} parent=0 // pred_check
    %p417 = pneg %p18
  $region23: #{gcn_lpa_conv.3} parent=0 // pred_check_branch
    %419 = sbr.rel (%p417) target = $region25
  $region24: #{gcn_lpa_conv.3} parent=0 // pred_region
    %v420 = vld [vmem:[#allocation2] sm:$0xff]
    %v421 = vld [vmem:[#allocation2 + $0x8] sm:$0xff]
    %v422 = vld [vmem:[#allocation2 + $0x10] sm:$0xff]
    %v423 = vld [vmem:[#allocation2 + $0x18] sm:$0xff]
    %v424 = vld [vmem:[#allocation2 + $0x20] sm:$0xff]
    %v425 = vld [vmem:[#allocation2 + $0x28] sm:$0xff]
    %v426 = vld [vmem:[#allocation2 + $0x30] sm:$0xff]
    %v427 = vld [vmem:[#allocation2 + $0x38] sm:$0xff]
    %v428 = vld [vmem:[#allocation2 + $0x40] sm:$0xff]
    %v429 = vld [vmem:[#allocation2 + $0x48] sm:$0xff]
    %v430 = vld [vmem:[#allocation2 + $0x50] sm:$0xff]
    %v431 = vld [vmem:[#allocation2 + $0x58] sm:$0xff]
    %v432 = vld [vmem:[#allocation2 + $0x60] sm:$0xff]
    %v433 = vld [vmem:[#allocation2 + $0x68] sm:$0xff]
    %v434 = vld [vmem:[#allocation2 + $0x70] sm:$0xff]
    %v435 = vld [vmem:[#allocation2 + $0x78] sm:$0xff]
    %v436 = vmax.f32 %v420, 1e-12
    %v437 = vmax.f32 %v421, 1e-12
    %v438 = vmax.f32 %v422, 1e-12
    %v439 = vmax.f32 %v423, 1e-12
    %v440 = vmax.f32 %v424, 1e-12
    %v441 = vmax.f32 %v425, 1e-12
    %v442 = vmax.f32 %v426, 1e-12
    %v443 = vmax.f32 %v427, 1e-12
    %v444 = vmax.f32 %v428, 1e-12
    %v445 = vmax.f32 %v429, 1e-12
    %v446 = vmax.f32 %v430, 1e-12
    %v447 = vmax.f32 %v431, 1e-12
    %v448 = vmax.f32 %v432, 1e-12
    %v449 = vmax.f32 %v433, 1e-12
    %v450 = vmax.f32 %v434, 1e-12
    %v451 = vmax.f32 %v435, 1e-12
    %v452 = vrcp.pop %v436
    %v453 = vrcp.pop %v437
    %v454 = vrcp.pop %v438
    %v455 = vrcp.pop %v439
    %v456 = vrcp.pop %v440
    %v457 = vrcp.pop %v441
    %v458 = vrcp.pop %v442
    %v459 = vrcp.pop %v443
    %v460 = vrcp.pop %v444
    %v461 = vrcp.pop %v445
    %v462 = vrcp.pop %v446
    %v463 = vrcp.pop %v447
    %v464 = vrcp.pop %v448
    %v465 = vrcp.pop %v449
    %v466 = vrcp.pop %v450
    %v467 = vrcp.pop %v451
    %v468 = vmul.f32 %v436, %v452
    %v469 = vmul.f32 %v437, %v453
    %v470 = vmul.f32 %v438, %v454
    %v471 = vmul.f32 %v439, %v455
    %v472 = vmul.f32 %v440, %v456
    %v473 = vmul.f32 %v441, %v457
    %v474 = vmul.f32 %v442, %v458
    %v475 = vmul.f32 %v443, %v459
    %v476 = vmul.f32 %v444, %v460
    %v477 = vmul.f32 %v445, %v461
    %v478 = vmul.f32 %v446, %v462
    %v479 = vmul.f32 %v447, %v463
    %v480 = vmul.f32 %v448, %v464
    %v481 = vmul.f32 %v449, %v465
    %v482 = vmul.f32 %v450, %v466
    %v483 = vmul.f32 %v451, %v467
    %v484 = vsub.f32 2.0, %v468
    %v485 = vsub.f32 2.0, %v469
    %v486 = vsub.f32 2.0, %v470
    %v487 = vsub.f32 2.0, %v471
    %v488 = vsub.f32 2.0, %v472
    %v489 = vsub.f32 2.0, %v473
    %v490 = vsub.f32 2.0, %v474
    %v491 = vsub.f32 2.0, %v475
    %v492 = vsub.f32 2.0, %v476
    %v493 = vsub.f32 2.0, %v477
    %v494 = vsub.f32 2.0, %v478
    %v495 = vsub.f32 2.0, %v479
    %v496 = vsub.f32 2.0, %v480
    %v497 = vsub.f32 2.0, %v481
    %v498 = vsub.f32 2.0, %v482
    %v499 = vsub.f32 2.0, %v483
    %v500 = vmul.f32 %v452, %v484
    %v501 = vmul.f32 %v453, %v485
    %v502 = vmul.f32 %v454, %v486
    %v503 = vmul.f32 %v455, %v487
    %v504 = vmul.f32 %v456, %v488
    %v505 = vmul.f32 %v457, %v489
    %v506 = vmul.f32 %v458, %v490
    %v507 = vmul.f32 %v459, %v491
    %v508 = vmul.f32 %v460, %v492
    %v509 = vmul.f32 %v461, %v493
    %v510 = vmul.f32 %v462, %v494
    %v511 = vmul.f32 %v463, %v495
    %v512 = vmul.f32 %v464, %v496
    %v513 = vmul.f32 %v465, %v497
    %v514 = vmul.f32 %v466, %v498
    %v515 = vmul.f32 %v467, %v499
    %v516 = vld [vmem:[%s4] sm:$0xff]
    %v517 = vld [vmem:[%s4 + $0x8] sm:$0xff]
    %v518 = vld [vmem:[%s4 + $0x10] sm:$0xff]
    %v519 = vld [vmem:[%s4 + $0x18] sm:$0xff]
    %v520 = vld [vmem:[%s4 + $0x20] sm:$0xff]
    %v521 = vld [vmem:[%s4 + $0x28] sm:$0xff]
    %v522 = vld [vmem:[%s4 + $0x30] sm:$0xff]
    %v523 = vld [vmem:[%s4 + $0x38] sm:$0xff]
    %v524 = vld [vmem:[%s4 + $0x40] sm:$0xff]
    %v525 = vld [vmem:[%s4 + $0x48] sm:$0xff]
    %v526 = vld [vmem:[%s4 + $0x50] sm:$0xff]
    %v527 = vld [vmem:[%s4 + $0x58] sm:$0xff]
    %v528 = vld [vmem:[%s4 + $0x60] sm:$0xff]
    %v529 = vld [vmem:[%s4 + $0x68] sm:$0xff]
    %v530 = vld [vmem:[%s4 + $0x70] sm:$0xff]
    %v531 = vld [vmem:[%s4 + $0x78] sm:$0xff]
    %533 = vset.pattern.permute.xlu0 0
    %534 = vperm.xlu0 %533, %v500
    %v535 = vpop.permute.xlu0 %534
    %538 = vset.pattern.permute.xlu0 0
    %539 = vperm.xlu0 %538, %v501
    %v540 = vpop.permute.xlu0 %539
    %543 = vset.pattern.permute.xlu0 0
    %544 = vperm.xlu0 %543, %v502
    %v545 = vpop.permute.xlu0 %544
    %548 = vset.pattern.permute.xlu0 0
    %549 = vperm.xlu0 %548, %v503
    %v550 = vpop.permute.xlu0 %549
    %553 = vset.pattern.permute.xlu0 0
    %554 = vperm.xlu0 %553, %v504
    %v555 = vpop.permute.xlu0 %554
    %558 = vset.pattern.permute.xlu0 0
    %559 = vperm.xlu0 %558, %v505
    %v560 = vpop.permute.xlu0 %559
    %563 = vset.pattern.permute.xlu0 0
    %564 = vperm.xlu0 %563, %v506
    %v565 = vpop.permute.xlu0 %564
    %568 = vset.pattern.permute.xlu0 0
    %569 = vperm.xlu0 %568, %v507
    %v570 = vpop.permute.xlu0 %569
    %573 = vset.pattern.permute.xlu0 0
    %574 = vperm.xlu0 %573, %v508
    %v575 = vpop.permute.xlu0 %574
    %578 = vset.pattern.permute.xlu0 0
    %579 = vperm.xlu0 %578, %v509
    %v580 = vpop.permute.xlu0 %579
    %583 = vset.pattern.permute.xlu0 0
    %584 = vperm.xlu0 %583, %v510
    %v585 = vpop.permute.xlu0 %584
    %588 = vset.pattern.permute.xlu0 0
    %589 = vperm.xlu0 %588, %v511
    %v590 = vpop.permute.xlu0 %589
    %593 = vset.pattern.permute.xlu0 0
    %594 = vperm.xlu0 %593, %v512
    %v595 = vpop.permute.xlu0 %594
    %598 = vset.pattern.permute.xlu0 0
    %599 = vperm.xlu0 %598, %v513
    %v600 = vpop.permute.xlu0 %599
    %603 = vset.pattern.permute.xlu0 0
    %604 = vperm.xlu0 %603, %v514
    %v605 = vpop.permute.xlu0 %604
    %608 = vset.pattern.permute.xlu0 0
    %609 = vperm.xlu0 %608, %v515
    %v610 = vpop.permute.xlu0 %609
    %v612 = vmul.f32 %v516, %v535
    %v613 = vmul.f32 %v517, %v540
    %v614 = vmul.f32 %v518, %v545
    %v615 = vmul.f32 %v519, %v550
    %v616 = vmul.f32 %v520, %v555
    %v617 = vmul.f32 %v521, %v560
    %v618 = vmul.f32 %v522, %v565
    %v619 = vmul.f32 %v523, %v570
    %v620 = vmul.f32 %v524, %v575
    %v621 = vmul.f32 %v525, %v580
    %v622 = vmul.f32 %v526, %v585
    %v623 = vmul.f32 %v527, %v590
    %v624 = vmul.f32 %v528, %v595
    %v625 = vmul.f32 %v529, %v600
    %v626 = vmul.f32 %v530, %v605
    %v627 = vmul.f32 %v531, %v610
    %v628 = vld [vmem:[%s3] sm:$0x1]
    %v630 = vlaneseq
    %v631 = vshrl.u32 %v630, 7
    %v632 = vsub.s32 0, %v631
    %v633 = vrot.slane %v628, %v632
    %v635 = vadd.f32 %v612, %v633
    %v636 = vadd.f32 %v613, %v633
    %v637 = vadd.f32 %v614, %v633
    %v638 = vadd.f32 %v615, %v633
    %v639 = vadd.f32 %v616, %v633
    %v640 = vadd.f32 %v617, %v633
    %v641 = vadd.f32 %v618, %v633
    %v642 = vadd.f32 %v619, %v633
    %v643 = vadd.f32 %v620, %v633
    %v644 = vadd.f32 %v621, %v633
    %v645 = vadd.f32 %v622, %v633
    %v646 = vadd.f32 %v623, %v633
    %v647 = vadd.f32 %v624, %v633
    %v648 = vadd.f32 %v625, %v633
    %v649 = vadd.f32 %v626, %v633
    %v650 = vadd.f32 %v627, %v633
    %651 = vst [vmem:[%s4] sm:$0xff] %v635
    %652 = vst [vmem:[%s4 + $0x8] sm:$0xff] %v636
    %653 = vst [vmem:[%s4 + $0x10] sm:$0xff] %v637
    %654 = vst [vmem:[%s4 + $0x18] sm:$0xff] %v638
    %655 = vst [vmem:[%s4 + $0x20] sm:$0xff] %v639
    %656 = vst [vmem:[%s4 + $0x28] sm:$0xff] %v640
    %657 = vst [vmem:[%s4 + $0x30] sm:$0xff] %v641
    %658 = vst [vmem:[%s4 + $0x38] sm:$0xff] %v642
    %659 = vst [vmem:[%s4 + $0x40] sm:$0xff] %v643
    %660 = vst [vmem:[%s4 + $0x48] sm:$0xff] %v644
    %661 = vst [vmem:[%s4 + $0x50] sm:$0xff] %v645
    %662 = vst [vmem:[%s4 + $0x58] sm:$0xff] %v646
    %663 = vst [vmem:[%s4 + $0x60] sm:$0xff] %v647
    %664 = vst [vmem:[%s4 + $0x68] sm:$0xff] %v648
    %665 = vst [vmem:[%s4 + $0x70] sm:$0xff] %v649
    %666 = vst [vmem:[%s4 + $0x78] sm:$0xff] %v650
  $region25: #{gcn_lpa_conv.3} parent=0 // pred_fallthru
    _
  // Predicated region
  $region26: #{gcn_lpa_conv.3} parent=0 // pred_check
    _
  $region27: #{gcn_lpa_conv.3} parent=0 // pred_check_branch
    %668 = sbr.rel (0) target = $region29
  $region28: #{gcn_lpa_conv.3} parent=0 // pred_region
    _
  $region29: #{gcn_lpa_conv.3} parent=0 // pred_fallthru
    _
  // Predicated region
  $region30: #{gcn_lpa_conv.3} parent=0 // pred_check
    _
  $region31: #{gcn_lpa_conv.3} parent=0 // pred_check_branch
    %670 = sbr.rel (0) target = $region33
  $region32: #{gcn_lpa_conv.3} parent=0 // pred_region
    _
  $region33: #{gcn_lpa_conv.3} parent=0 // pred_fallthru
    _

</llo_original>
